<compile_context>
chip_gen: v7x
topology: tpu7x:2x2x1
jax: 0.10.0
libtpu: 0.0.40
codegen_flags: <defaults>
</compile_context>

<pallas_src>
import jax
import jax.numpy as jnp
from jax import lax
from jax.experimental import pallas as pl
from jax.experimental.pallas import tpu as pltpu


def _make_down_kernel(nb, Hp, Wp, Cin, Cmid, Cout):
    """Kernel body closure over the static dims."""
    P = Hp + 2                      # padded rows per batch item (1 halo top/bottom)
    R = nb * P                      # pad-slab rows for the whole batch tile
    M = R - 2                       # matmul M rows (nb*Hp valid + 2*(nb-1) masked)
    K1, N1 = Wp * Cin, Wp * Cmid
    K2, N2 = Wp * Cmid, Wp * Cout

    def banded_conv(pad_ref, rhs_ref, sh_ref):
        # pad_ref: (R, K) zero-halo slab; rhs_ref: (3, K, Nout) banded weights
        # (BN scale folded in); sh_ref: (1, Nout) f32 BN shift.
        acc = None
        for dy in range(3):                     # 3 MXU matmuls, plain 2-D slices
            lhs = pad_ref[dy:dy + M, :]
            part = jnp.dot(lhs, rhs_ref[dy], preferred_element_type=jnp.float32)
            acc = part if acc is None else acc + part
        return jnp.maximum(acc + sh_ref[...], 0.0)   # BN shift + ReLU in f32

    def kernel(x4_ref, rhs1_ref, sh1_ref, rhs2_ref, sh2_ref, o_ref,
               pad1_ref, pad2_ref):
        # ---- MaxPool2d(2): 3 VPU maxima over the 4 pre-split window taps.
        pooled = jnp.maximum(jnp.maximum(x4_ref[0], x4_ref[1]),
                             jnp.maximum(x4_ref[2], x4_ref[3]))  # (nb, Hp, K1)

        # ---- Fill pad1: zero only the 2 halo rows per batch item, write the
        #      pooled interior (starts at lane 0 — no column padding needed).
        z1 = jnp.zeros((1, K1), pad1_ref.dtype)
        for b in range(nb):
            pad1_ref[b * P:b * P + 1, :] = z1
            pad1_ref[b * P + Hp + 1:b * P + Hp + 2, :] = z1
            pad1_ref[b * P + 1:b * P + 1 + Hp, :] = pooled[b]

        # ---- conv1 + BN + ReLU.
        y1 = banded_conv(pad1_ref, rhs1_ref, sh1_ref)            # (M, N1) f32

        # ---- Fill pad2: one bulk interior store, then re-zero the halo rows
        #      (the bulk store put cross-batch garbage rows there).
        pad2_ref[1:1 + M, :] = y1.astype(pad2_ref.dtype)
        z2 = jnp.zeros((1, K2), pad2_ref.dtype)
        for b in range(nb):
            pad2_ref[b * P:b * P + 1, :] = z2
            pad2_ref[b * P + Hp + 1:b * P + Hp + 2, :] = z2

        # ---- conv2 + BN + ReLU.
        y2 = banded_conv(pad2_ref, rhs2_ref, sh2_ref)            # (M, N2) f32

        # ---- Store the valid rows per batch item (lane dim = Wp*Cout).
        for b in range(nb):
            o_ref[b, :, :] = y2[b * P:b * P + Hp, :].astype(o_ref.dtype)

    return kernel


def _banded_weights(w_oihw, scale, Wp, dtype):
    """Fold BN scale into the conv weights; lay them out as banded matrices.

    Returns rhs of shape (3, Wp*Cin, Wp*Cout) with
      rhs[dy, win*Cin + i, w*Cout + o] = w[o, i, dy, win - w + 1] * scale[o]
    for 0 <= win - w + 1 <= 2 and zero elsewhere, so that for each kernel row
    dy, (row slab) @ rhs[dy] accumulates the 3x3 conv directly in the
    lane-dense (rows, Wp*Cout) layout.  W zero-padding is implicit (the
    out-of-range taps simply have no band row).  Fully vectorized (no O(Wp)
    traced-op loop).
    """
    Cout, Cin = w_oihw.shape[0], w_oihw.shape[1]
    wf = w_oihw.astype(jnp.float32) * scale.astype(jnp.float32)[:, None, None, None]
    wk = jnp.transpose(wf, (2, 3, 1, 0))            # (3, 3, Cin, Cout) = [dy, dx, i, o]
    win = jnp.arange(Wp)[:, None]                   # input column
    wout = jnp.arange(Wp)[None, :]                  # output column
    dx = win - wout + 1                             # (Wp, Wp)
    valid = ((dx >= 0) & (dx <= 2)).astype(jnp.float32)
    dxc = jnp.clip(dx, 0, 2)
    band = wk[:, dxc] * valid[None, :, :, None, None]   # (3, Wp, Wp, Cin, Cout)
    rhs = jnp.transpose(band, (0, 1, 3, 2, 4)).reshape(3, Wp * Cin, Wp * Cout)
    return rhs.astype(dtype)


def down_forward(x_nchw, w1_oihw, scale1, shift1, w2_oihw, scale2, shift2,
                 *, compute_dtype=jnp.float32, batch_block=None):
    """x_nchw: (N, Cin, H, W).  Returns (N, Cout, H//2, W//2) in float32."""
    N, Cin, H, W = x_nchw.shape
    Cmid = w1_oihw.shape[0]
    Cout = w2_oihw.shape[0]
    assert H % 2 == 0 and W % 2 == 0, "MaxPool2d(2): even H, W assumed"
    Hp, Wp = H // 2, W // 2
    isz = jnp.dtype(compute_dtype).itemsize

    # ---- batch tile: aim for >= 2 grid steps (pipelining / megacore) while
    #      keeping the per-step x4 + output blocks inside a small VMEM budget.
    if batch_block is None:
        per_item = 2 * (4 * Hp * Wp * Cin * isz) + 2 * (Hp * Wp * Cout * 4)
        nb = max(1, min(N // 2 if N >= 2 else 1, (8 << 20) // max(per_item, 1)))
        while N % nb:
            nb -= 1
    else:
        nb = batch_block
        assert N % nb == 0

    # ---- single fused layout transform (NCHW -> pooling-tap split, lane = w*Cin):
    #      x4[a*2+b, n, h, w*Cin+i] = x[n, i, 2h+a, 2w+b]
    x6 = x_nchw.reshape(N, Cin, Hp, 2, Wp, 2)
    x4 = jnp.transpose(x6, (3, 5, 0, 2, 4, 1)).reshape(4, N, Hp, Wp * Cin)
    x4 = x4.astype(compute_dtype)

    # ---- banded weights (BN scale folded in) + tiled BN shifts (kept f32).
    rhs1 = _banded_weights(w1_oihw, scale1, Wp, compute_dtype)  # (3, Wp*Cin,  Wp*Cmid)
    rhs2 = _banded_weights(w2_oihw, scale2, Wp, compute_dtype)  # (3, Wp*Cmid, Wp*Cout)
    sh1 = jnp.tile(shift1.astype(jnp.float32), Wp).reshape(1, Wp * Cmid)
    sh2 = jnp.tile(shift2.astype(jnp.float32), Wp).reshape(1, Wp * Cout)

    K1, N1 = Wp * Cin, Wp * Cmid
    K2, N2 = Wp * Cmid, Wp * Cout
    P = Hp + 2
    R = nb * P

    # ---- explicit VMEM budget (double-buffered inputs/outputs + scratch slabs).
    vmem_bytes = (2 * 4 * nb * Hp * K1 * isz          # x4 block
                  + 2 * 3 * (K1 * N1 + K2 * N2) * isz  # banded weights
                  + 2 * (N1 + N2) * 4                  # shifts
                  + 2 * nb * Hp * N2 * 4               # output block
                  + R * (K1 + K2) * isz)               # pad slabs (scratch)
    vmem_limit = int(min(64 << 20, max(32 << 20, 2 * vmem_bytes)))

    kernel = _make_down_kernel(nb, Hp, Wp, Cin, Cmid, Cout)

    out = pl.pallas_call(
        kernel,
        out_shape=jax.ShapeDtypeStruct((N, Hp, Wp * Cout), jnp.float32),
        grid_spec=pltpu.PrefetchScalarGridSpec(
            num_scalar_prefetch=0,
            grid=(N // nb,),
            in_specs=[
                pl.BlockSpec((4, nb, Hp, K1), lambda g: (0, g, 0, 0)),
                pl.BlockSpec((3, K1, N1), lambda g: (0, 0, 0)),
                pl.BlockSpec((1, N1), lambda g: (0, 0)),
                pl.BlockSpec((3, K2, N2), lambda g: (0, 0, 0)),
                pl.BlockSpec((1, N2), lambda g: (0, 0)),
            ],
            out_specs=pl.BlockSpec((nb, Hp, N2), lambda g: (g, 0, 0)),
            scratch_shapes=[
                pltpu.VMEM((R, K1), compute_dtype),   # pad slab for conv1
                pltpu.VMEM((R, K2), compute_dtype),   # pad slab for conv2
            ]),
        compiler_params=pltpu.CompilerParams(
            dimension_semantics=("parallel",),
            vmem_limit_bytes=vmem_limit),
    )(x4, rhs1, sh1, rhs2, sh2)

    # (N, Hp, Wp*Cout) -> NCHW
    return jnp.transpose(out.reshape(N, Hp, Wp, Cout), (0, 3, 1, 2))


def _reference_down(x_nchw, w1, s1, b1, w2, s2, b2):
    """Pure-JAX reference (mirrors PyTorch NCHW semantics, BN in eval mode)."""
    xp = lax.reduce_window(x_nchw, -jnp.inf, lax.max,
                           (1, 1, 2, 2), (1, 1, 2, 2), "VALID")

    def conv_bn_relu(x, w, s, b):
        y = lax.conv_general_dilated(
            x, w, window_strides=(1, 1), padding=((1, 1), (1, 1)),
            dimension_numbers=("NCHW", "OIHW", "NCHW"),
            precision=lax.Precision.HIGHEST)
        y = y * s[None, :, None, None] + b[None, :, None, None]
        return jnp.maximum(y, 0.0)

    h = conv_bn_relu(xp, w1, s1, b1)
    return conv_bn_relu(h, w2, s2, b2)


if __name__ == "__main__":
    # Small shapes consistent with Down(in_channels=4, out_channels=8)
    N, Cin, H, W = 2, 4, 16, 16
    Cmid = Cout = 8

    key = jax.random.PRNGKey(0)
    k_x, k_w1, k_w2, k_g1, k_g2 = jax.random.split(key, 5)

    x = jax.random.normal(k_x, (N, Cin, H, W), jnp.float32)

    # Conv weights (no bias), PyTorch OIHW shapes
    w1 = jax.random.normal(k_w1, (Cmid, Cin, 3, 3), jnp.float32) * 0.2
    w2 = jax.random.normal(k_w2, (Cout, Cmid, 3, 3), jnp.float32) * 0.2

    # BatchNorm params + running stats (inference mode), deterministic
    eps = 1e-5
    gamma1 = 1.0 + 0.1 * jax.random.normal(k_g1, (Cmid,), jnp.float32)
    beta1 = 0.05 * jnp.arange(Cmid, dtype=jnp.float32)
    rmean1 = 0.02 * jnp.arange(Cmid, dtype=jnp.float32)
    rvar1 = 1.0 + 0.01 * jnp.arange(Cmid, dtype=jnp.float32)
    gamma2 = 1.0 + 0.1 * jax.random.normal(k_g2, (Cout,), jnp.float32)
    beta2 = -0.03 * jnp.arange(Cout, dtype=jnp.float32)
    rmean2 = 0.01 * jnp.arange(Cout, dtype=jnp.float32)
    rvar2 = 1.0 + 0.02 * jnp.arange(Cout, dtype=jnp.float32)

    # Fold BN (eval mode) into per-channel scale/shift
    scale1 = gamma1 / jnp.sqrt(rvar1 + eps)
    shift1 = beta1 - rmean1 * scale1
    scale2 = gamma2 / jnp.sqrt(rvar2 + eps)
    shift2 = beta2 - rmean2 * scale2

    out = down_forward(x, w1, scale1, shift1, w2, scale2, shift2)
    out = jax.block_until_ready(out)

    ref = _reference_down(x, w1, scale1, shift1, w2, scale2, shift2)
    assert out.shape == (N, Cout, H // 2, W // 2), out.shape
    max_err = float(jnp.max(jnp.abs(out - ref)))
    assert jnp.allclose(out, ref, atol=1e-3, rtol=1e-3), max_err

    print("KERNEL_OK")
</pallas_src>

<mosaic_0001>
module attributes {stable_mosaic.version = 11 : i64} {
  func.func @kernel(%arg0: i32, %arg1: memref<4x1x8x32xf32, #tpu.memory_space<vmem>>, %arg2: memref<3x32x64xf32, #tpu.memory_space<vmem>>, %arg3: memref<1x64xf32, #tpu.memory_space<vmem>>, %arg4: memref<3x64x64xf32, #tpu.memory_space<vmem>>, %arg5: memref<1x64xf32, #tpu.memory_space<vmem>>, %arg6: memref<1x8x64xf32, #tpu.memory_space<vmem>>, %arg7: memref<10x32xf32, #tpu.memory_space<vmem>>, %arg8: memref<10x64xf32, #tpu.memory_space<vmem>>) attributes {dimension_semantics = [#tpu.dimension_semantics<parallel>], iteration_bounds = array<i64: 2>, scalar_prefetch = 0 : i64, scratch_operands = 2 : i64, tpu.core_type = #tpu.core_type<tc>, window_params = [{transform_indices = @transform_0, window_bounds = array<i64: 4, 1, 8, 32>}, {pipeline_mode = #tpu.pipeline_mode<synchronous>, transform_indices = @transform_1, window_bounds = array<i64: 3, 32, 64>}, {pipeline_mode = #tpu.pipeline_mode<synchronous>, transform_indices = @transform_2, window_bounds = array<i64: 1, 64>}, {pipeline_mode = #tpu.pipeline_mode<synchronous>, transform_indices = @transform_3, window_bounds = array<i64: 3, 64, 64>}, {pipeline_mode = #tpu.pipeline_mode<synchronous>, transform_indices = @transform_4, window_bounds = array<i64: 1, 64>}, {transform_indices = @transform_5, window_bounds = array<i64: 1, 8, 64>}]} {
    %c0 = arith.constant 0 : index
    %c0_0 = arith.constant 0 : index
    %c0_1 = arith.constant 0 : index
    %c0_2 = arith.constant 0 : index
    %0 = vector.load %arg1[%c0, %c0_0, %c0_1, %c0_2] : memref<4x1x8x32xf32, #tpu.memory_space<vmem>>, vector<1x1x8x32xf32>
    %1 = vector.shape_cast %0 : vector<1x1x8x32xf32> to vector<1x8x32xf32>
    %c1 = arith.constant 1 : index
    %c0_3 = arith.constant 0 : index
    %c0_4 = arith.constant 0 : index
    %c0_5 = arith.constant 0 : index
    %2 = vector.load %arg1[%c1, %c0_3, %c0_4, %c0_5] : memref<4x1x8x32xf32, #tpu.memory_space<vmem>>, vector<1x1x8x32xf32>
    %3 = vector.shape_cast %2 : vector<1x1x8x32xf32> to vector<1x8x32xf32>
    %4 = arith.maximumf %1, %3 : vector<1x8x32xf32>
    %c2 = arith.constant 2 : index
    %c0_6 = arith.constant 0 : index
    %c0_7 = arith.constant 0 : index
    %c0_8 = arith.constant 0 : index
    %5 = vector.load %arg1[%c2, %c0_6, %c0_7, %c0_8] : memref<4x1x8x32xf32, #tpu.memory_space<vmem>>, vector<1x1x8x32xf32>
    %6 = vector.shape_cast %5 : vector<1x1x8x32xf32> to vector<1x8x32xf32>
    %c3 = arith.constant 3 : index
    %c0_9 = arith.constant 0 : index
    %c0_10 = arith.constant 0 : index
    %c0_11 = arith.constant 0 : index
    %7 = vector.load %arg1[%c3, %c0_9, %c0_10, %c0_11] : memref<4x1x8x32xf32, #tpu.memory_space<vmem>>, vector<1x1x8x32xf32>
    %8 = vector.shape_cast %7 : vector<1x1x8x32xf32> to vector<1x8x32xf32>
    %9 = arith.maximumf %6, %8 : vector<1x8x32xf32>
    %10 = arith.maximumf %4, %9 : vector<1x8x32xf32>
    %cst = arith.constant 0.000000e+00 : f32
    %11 = vector.broadcast %cst : f32 to vector<1x32xf32>
    %c0_12 = arith.constant 0 : index
    %c0_13 = arith.constant 0 : index
    %12 = vector.load %arg7[%c0_12, %c0_13] : memref<10x32xf32, #tpu.memory_space<vmem>>, vector<1x32xf32>
    tpu.vector_store %arg7[%c0_12, %c0_13], %11 {strides = array<i32>} : memref<10x32xf32, #tpu.memory_space<vmem>>, vector<1x32xf32>,
    %c9 = arith.constant 9 : index
    %c0_14 = arith.constant 0 : index
    %13 = vector.load %arg7[%c9, %c0_14] : memref<10x32xf32, #tpu.memory_space<vmem>>, vector<1x32xf32>
    tpu.vector_store %arg7[%c9, %c0_14], %11 {strides = array<i32>} : memref<10x32xf32, #tpu.memory_space<vmem>>, vector<1x32xf32>,
    %14 = vector.shape_cast %10 : vector<1x8x32xf32> to vector<8x32xf32>
    %c1_15 = arith.constant 1 : index
    %c0_16 = arith.constant 0 : index
    %15 = vector.load %arg7[%c1_15, %c0_16] : memref<10x32xf32, #tpu.memory_space<vmem>>, vector<8x32xf32>
    tpu.vector_store %arg7[%c1_15, %c0_16], %14 {strides = array<i32>} : memref<10x32xf32, #tpu.memory_space<vmem>>, vector<8x32xf32>,
    %c0_17 = arith.constant 0 : index
    %c0_18 = arith.constant 0 : index
    %16 = vector.load %arg7[%c0_17, %c0_18] : memref<10x32xf32, #tpu.memory_space<vmem>>, vector<8x32xf32>
    %c0_19 = arith.constant 0 : index
    %c0_20 = arith.constant 0 : index
    %c0_21 = arith.constant 0 : index
    %17 = vector.load %arg2[%c0_19, %c0_20, %c0_21] : memref<3x32x64xf32, #tpu.memory_space<vmem>>, vector<1x32x64xf32>
    %18 = vector.shape_cast %17 : vector<1x32x64xf32> to vector<32x64xf32>
    %cst_22 = arith.constant dense<0.000000e+00> : vector<8x64xf32>
    %19 = tpu.matmul %16, %18, %cst_22 {dimension_numbers = #tpu.dot_dimension_numbers<[1], [0], [0], [1], [0, 0, 1, 1], [], []>} : vector<8x32xf32>, vector<32x64xf32>, vector<8x64xf32> -> vector<8x64xf32>
    %c1_23 = arith.constant 1 : index
    %c0_24 = arith.constant 0 : index
    %20 = vector.load %arg7[%c1_23, %c0_24] : memref<10x32xf32, #tpu.memory_space<vmem>>, vector<8x32xf32>
    %c1_25 = arith.constant 1 : index
    %c0_26 = arith.constant 0 : index
    %c0_27 = arith.constant 0 : index
    %21 = vector.load %arg2[%c1_25, %c0_26, %c0_27] : memref<3x32x64xf32, #tpu.memory_space<vmem>>, vector<1x32x64xf32>
    %22 = vector.shape_cast %21 : vector<1x32x64xf32> to vector<32x64xf32>
    %cst_28 = arith.constant dense<0.000000e+00> : vector<8x64xf32>
    %23 = tpu.matmul %20, %22, %cst_28 {dimension_numbers = #tpu.dot_dimension_numbers<[1], [0], [0], [1], [0, 0, 1, 1], [], []>} : vector<8x32xf32>, vector<32x64xf32>, vector<8x64xf32> -> vector<8x64xf32>
    %24 = arith.addf %19, %23 : vector<8x64xf32>
    %c2_29 = arith.constant 2 : index
    %c0_30 = arith.constant 0 : index
    %25 = vector.load %arg7[%c2_29, %c0_30] : memref<10x32xf32, #tpu.memory_space<vmem>>, vector<8x32xf32>
    %c2_31 = arith.constant 2 : index
    %c0_32 = arith.constant 0 : index
    %c0_33 = arith.constant 0 : index
    %26 = vector.load %arg2[%c2_31, %c0_32, %c0_33] : memref<3x32x64xf32, #tpu.memory_space<vmem>>, vector<1x32x64xf32>
    %27 = vector.shape_cast %26 : vector<1x32x64xf32> to vector<32x64xf32>
    %cst_34 = arith.constant dense<0.000000e+00> : vector<8x64xf32>
    %28 = tpu.matmul %25, %27, %cst_34 {dimension_numbers = #tpu.dot_dimension_numbers<[1], [0], [0], [1], [0, 0, 1, 1], [], []>} : vector<8x32xf32>, vector<32x64xf32>, vector<8x64xf32> -> vector<8x64xf32>
    %29 = arith.addf %24, %28 : vector<8x64xf32>
    %c0_35 = arith.constant 0 : index
    %c0_36 = arith.constant 0 : index
    %30 = vector.load %arg3[%c0_35, %c0_36] : memref<1x64xf32, #tpu.memory_space<vmem>>, vector<1x64xf32>
    %31 = vector.broadcast %30 : vector<1x64xf32> to vector<8x64xf32>
    %32 = arith.addf %29, %31 : vector<8x64xf32>
    %cst_37 = arith.constant 0.000000e+00 : f32
    %33 = vector.broadcast %cst_37 : f32 to vector<8x64xf32>
    %34 = arith.maximumf %32, %33 : vector<8x64xf32>
    %c1_38 = arith.constant 1 : index
    %c0_39 = arith.constant 0 : index
    %35 = vector.load %arg8[%c1_38, %c0_39] : memref<10x64xf32, #tpu.memory_space<vmem>>, vector<8x64xf32>
    tpu.vector_store %arg8[%c1_38, %c0_39], %34 {strides = array<i32>} : memref<10x64xf32, #tpu.memory_space<vmem>>, vector<8x64xf32>,
    %cst_40 = arith.constant 0.000000e+00 : f32
    %36 = vector.broadcast %cst_40 : f32 to vector<1x64xf32>
    %c0_41 = arith.constant 0 : index
    %c0_42 = arith.constant 0 : index
    %37 = vector.load %arg8[%c0_41, %c0_42] : memref<10x64xf32, #tpu.memory_space<vmem>>, vector<1x64xf32>
    tpu.vector_store %arg8[%c0_41, %c0_42], %36 {strides = array<i32>} : memref<10x64xf32, #tpu.memory_space<vmem>>, vector<1x64xf32>,
    %c9_43 = arith.constant 9 : index
    %c0_44 = arith.constant 0 : index
    %38 = vector.load %arg8[%c9_43, %c0_44] : memref<10x64xf32, #tpu.memory_space<vmem>>, vector<1x64xf32>
    tpu.vector_store %arg8[%c9_43, %c0_44], %36 {strides = array<i32>} : memref<10x64xf32, #tpu.memory_space<vmem>>, vector<1x64xf32>,
    %c0_45 = arith.constant 0 : index
    %c0_46 = arith.constant 0 : index
    %39 = vector.load %arg8[%c0_45, %c0_46] : memref<10x64xf32, #tpu.memory_space<vmem>>, vector<8x64xf32>
    %c0_47 = arith.constant 0 : index
    %c0_48 = arith.constant 0 : index
    %c0_49 = arith.constant 0 : index
    %40 = vector.load %arg4[%c0_47, %c0_48, %c0_49] : memref<3x64x64xf32, #tpu.memory_space<vmem>>, vector<1x64x64xf32>
    %41 = vector.shape_cast %40 : vector<1x64x64xf32> to vector<64x64xf32>
    %cst_50 = arith.constant dense<0.000000e+00> : vector<8x64xf32>
    %42 = tpu.matmul %39, %41, %cst_50 {dimension_numbers = #tpu.dot_dimension_numbers<[1], [0], [0], [1], [0, 0, 1, 1], [], []>} : vector<8x64xf32>, vector<64x64xf32>, vector<8x64xf32> -> vector<8x64xf32>
    %c1_51 = arith.constant 1 : index
    %c0_52 = arith.constant 0 : index
    %43 = vector.load %arg8[%c1_51, %c0_52] : memref<10x64xf32, #tpu.memory_space<vmem>>, vector<8x64xf32>
    %c1_53 = arith.constant 1 : index
    %c0_54 = arith.constant 0 : index
    %c0_55 = arith.constant 0 : index
    %44 = vector.load %arg4[%c1_53, %c0_54, %c0_55] : memref<3x64x64xf32, #tpu.memory_space<vmem>>, vector<1x64x64xf32>
    %45 = vector.shape_cast %44 : vector<1x64x64xf32> to vector<64x64xf32>
    %cst_56 = arith.constant dense<0.000000e+00> : vector<8x64xf32>
    %46 = tpu.matmul %43, %45, %cst_56 {dimension_numbers = #tpu.dot_dimension_numbers<[1], [0], [0], [1], [0, 0, 1, 1], [], []>} : vector<8x64xf32>, vector<64x64xf32>, vector<8x64xf32> -> vector<8x64xf32>
    %47 = arith.addf %42, %46 : vector<8x64xf32>
    %c2_57 = arith.constant 2 : index
    %c0_58 = arith.constant 0 : index
    %48 = vector.load %arg8[%c2_57, %c0_58] : memref<10x64xf32, #tpu.memory_space<vmem>>, vector<8x64xf32>
    %c2_59 = arith.constant 2 : index
    %c0_60 = arith.constant 0 : index
    %c0_61 = arith.constant 0 : index
    %49 = vector.load %arg4[%c2_59, %c0_60, %c0_61] : memref<3x64x64xf32, #tpu.memory_space<vmem>>, vector<1x64x64xf32>
    %50 = vector.shape_cast %49 : vector<1x64x64xf32> to vector<64x64xf32>
    %cst_62 = arith.constant dense<0.000000e+00> : vector<8x64xf32>
    %51 = tpu.matmul %48, %50, %cst_62 {dimension_numbers = #tpu.dot_dimension_numbers<[1], [0], [0], [1], [0, 0, 1, 1], [], []>} : vector<8x64xf32>, vector<64x64xf32>, vector<8x64xf32> -> vector<8x64xf32>
    %52 = arith.addf %47, %51 : vector<8x64xf32>
    %c0_63 = arith.constant 0 : index
    %c0_64 = arith.constant 0 : index
    %53 = vector.load %arg5[%c0_63, %c0_64] : memref<1x64xf32, #tpu.memory_space<vmem>>, vector<1x64xf32>
    %54 = vector.broadcast %53 : vector<1x64xf32> to vector<8x64xf32>
    %55 = arith.addf %52, %54 : vector<8x64xf32>
    %cst_65 = arith.constant 0.000000e+00 : f32
    %56 = vector.broadcast %cst_65 : f32 to vector<8x64xf32>
    %57 = arith.maximumf %55, %56 : vector<8x64xf32>
    %c0_66 = arith.constant 0 : index
    %c0_67 = arith.constant 0 : index
    %c0_68 = arith.constant 0 : index
    %58 = vector.load %arg6[%c0_66, %c0_67, %c0_68] : memref<1x8x64xf32, #tpu.memory_space<vmem>>, vector<1x8x64xf32>
    %59 = vector.shape_cast %58 : vector<1x8x64xf32> to vector<8x64xf32>
    %60 = vector.shape_cast %57 : vector<8x64xf32> to vector<1x8x64xf32>
    tpu.vector_store %arg6[%c0_66, %c0_67, %c0_68], %60 {strides = array<i32>} : memref<1x8x64xf32, #tpu.memory_space<vmem>>, vector<1x8x64xf32>,
    return
  }
  func.func @transform_0(%arg0: i32) -> (i32, i32, i32, i32) {
    %c0_i32 = arith.constant 0 : i32
    %c0_i32_0 = arith.constant 0 : i32
    %c0_i32_1 = arith.constant 0 : i32
    %c0_i32_2 = arith.constant 0 : i32
    return %c0_i32, %arg0, %c0_i32_0, %c0_i32_1 : i32, i32, i32, i32
  }
  func.func @transform_1(%arg0: i32) -> (i32, i32, i32) {
    %c0_i32 = arith.constant 0 : i32
    %c0_i32_0 = arith.constant 0 : i32
    %c0_i32_1 = arith.constant 0 : i32
    %c0_i32_2 = arith.constant 0 : i32
    return %c0_i32, %c0_i32_0, %c0_i32_1 : i32, i32, i32
  }
  func.func @transform_2(%arg0: i32) -> (i32, i32) {
    %c0_i32 = arith.constant 0 : i32
    %c0_i32_0 = arith.constant 0 : i32
    %c0_i32_1 = arith.constant 0 : i32
    return %c0_i32, %c0_i32_0 : i32, i32
  }
  func.func @transform_3(%arg0: i32) -> (i32, i32, i32) {
    %c0_i32 = arith.constant 0 : i32
    %c0_i32_0 = arith.constant 0 : i32
    %c0_i32_1 = arith.constant 0 : i32
    %c0_i32_2 = arith.constant 0 : i32
    return %c0_i32, %c0_i32_0, %c0_i32_1 : i32, i32, i32
  }
  func.func @transform_4(%arg0: i32) -> (i32, i32) {
    %c0_i32 = arith.constant 0 : i32
    %c0_i32_0 = arith.constant 0 : i32
    %c0_i32_1 = arith.constant 0 : i32
    return %c0_i32, %c0_i32_0 : i32, i32
  }
  func.func @transform_5(%arg0: i32) -> (i32, i32, i32) {
    %c0_i32 = arith.constant 0 : i32
    %c0_i32_0 = arith.constant 0 : i32
    %c0_i32_1 = arith.constant 0 : i32
    return %arg0, %c0_i32, %c0_i32_0 : i32, i32, i32
  }
}

</mosaic_0001>

<llo_original>
// kernel: tpu_custom_call.1
$region0: #{tpu_custom_call.1}
  #allocation0 [shape = 'u32[]', space=smem, size = 0x4, offset = 0x4, fixed_abs, tag = 'smem constant byte address 0x4 - core index']
  #allocation1 [shape = 'u32[144,128]{1,0:T(1,128)}', space=vmem, size = 0x12000, scoped, tag = 'internal scratch']
  #allocation2 [shape = 'f32[10,32]{1,0:T(8,128)}', space=vmem, size = 0x2000, scoped, tag = 'scratch operand']
  #allocation3 [shape = 'f32[10,64]{1,0:T(8,128)}', space=vmem, size = 0x2000, scoped, tag = 'scratch operand']
  %s0 = inlined_call_operand.hbm [shape: f32[4,2,8,32], index: 0, kind: input, shape index: {}]
  %s1 = inlined_call_operand.hbm [shape: f32[3,32,64], index: 1, kind: input, shape index: {}]
  %s2 = inlined_call_operand.vmem [shape: f32[1,64], index: 2, kind: input, shape index: {}]
  %s3 = inlined_call_operand.hbm [shape: f32[3,64,64], index: 3, kind: input, shape index: {}]
  %s4 = inlined_call_operand.vmem [shape: f32[1,64], index: 4, kind: input, shape index: {}]
  %s5 = inlined_call_operand.hbm [shape: f32[2,8,64], index: 5, kind: output, shape index: {}]
  %s6 = sld [smem:[#allocation0]]
  $region65: #{tpu_custom_call.1} parent=0
    _
  %s8 = ssub.s32 1, %s6
  %s9 = scalar_select 0, %s8, %s6
  $region1: #{tpu_custom_call.1} parent=0
    #allocation4 [shape = 'u8[32768]{0}', space=vmem, size = 0x8000, scoped, tag = 'input window, operand 0']
    #allocation5 [shape = 's32[2]{0}', space=sflag, size = 0x8, scoped, tag = 'scoped memory for tpu_custom_call.1']
    #allocation6 [shape = 's32[2]{0}', space=sflag, size = 0x8, scoped, tag = 'scoped memory for tpu_custom_call.1']
    #allocation7 [shape = 'u8[49152]{0}', space=vmem, size = 0xc000, scoped, tag = 'input window, operand 1, single buffered']
    #allocation8 [shape = 's32[1]{0}', space=sflag, size = 0x4, scoped, tag = 'scoped memory for tpu_custom_call.1']
    #allocation9 [shape = 'u8[98304]{0}', space=vmem, size = 0x18000, scoped, tag = 'input window, operand 3, single buffered']
    #allocation10 [shape = 'u8[8192]{0}', space=vmem, size = 0x2000, scoped, tag = 'output window, operand 0']
    %10 = vsyncpa [#allocation5], 0
    %s11 = scalar_lea.sflag [#allocation5], 1
    %12 = vsyncpa %s11, 0
    %13 = vsyncpa [#allocation8], 0
    %14 = vsyncpa [#allocation6], 0
    %s15 = scalar_lea.sflag [#allocation6], 1
    %16 = vsyncpa %s15, 0
    loop: start=0, step=1, limit=4
    $region2: #{tpu_custom_call.1} parent=1 // loop_pre_header
      _
    $region3: #{tpu_custom_call.1} parent=1 // loop_header
      %s18 = sphi 0, %s22
      %p19 = scmp.ge.s32.totalorder %s18, 4
      %s28 = sphi 0, %s30
      %s31 = sphi 0, %s28
      %s32 = sphi 0, %s31
      %s48 = sphi 0, %s32
      %s52 = sphi 0, %s52
      %s54 = sphi 0, %s52
      %s55 = sphi 0, %s54
      %s69 = sphi 0, %s55
      %s73 = sphi 0, %s73
      %s75 = sphi 0, %s73
      %s76 = sphi 0, %s75
      %s90 = sphi 0, %s76
      %s94 = sphi 0, %s94
      %s96 = sphi 0, %s94
      %s97 = sphi 0, %s96
      %s111 = sphi 0, %s97
      %s115 = sphi 0, %s115
      %s117 = sphi 0, %s115
      %s118 = sphi 0, %s117
      %s132 = sphi 0, %s118
      %s138 = sphi 0, %s140
      %s141 = sphi 0, %s138
      %s142 = sphi 0, %s141
      %s158 = sphi 0, %s142
    $region4: #{tpu_custom_call.1} parent=1 // loop_header_branch
      %21 = sbr.rel (%p19) target = $region8
    $region5: #{tpu_custom_call.1} parent=1 // loop_body
      %s23 = ssub.s32 %s18, 1
      %s24 = ssub.s32 %s18, 2
      %s25 = sadd.s32 %s18, 1
      %s26 = ssub.s32 %s18, %s25
      %p27 = scmp.eq.s32.totalorder %s26, 0
      %s29 = sadd.s32 %s28, 1
      %s30 = scalar_select %p27, %s28, %s29
      %p33 = pneg %p27
      %p34 = scmp.eq.s32.totalorder %s18, 1
      %p35 = por %p33, %p34
      %p36 = scmp.ne.s32.totalorder %s28, %s31
      %p37 = scmp.eq.s32.totalorder %s18, 0
      %p38 = por %p36, %p37
      %p39 = scmp.ne.s32.totalorder %s28, %s31
      %p40 = scmp.eq.s32.totalorder %s23, 1
      %p41 = por %p39, %p40
      %p42 = scmp.ne.s32.totalorder %s31, %s32
      %p43 = scmp.eq.s32.totalorder %s23, 0
      %p44 = por %p42, %p43
      %p45 = scmp.ne.s32.totalorder %s31, %s32
      %p46 = scmp.eq.s32.totalorder %s24, 1
      %p47 = por %p45, %p46
      %p49 = scmp.ne.s32.totalorder %s32, %s48
      %p50 = scmp.eq.s32.totalorder %s24, 0
      %p51 = por %p49, %p50
      %s53 = sadd.s32 %s52, 1
      %p56 = scmp.eq.s32.totalorder %s18, 1
      %p57 = scmp.ne.s32.totalorder %s52, %s54
      %p58 = scmp.eq.s32.totalorder %s18, 0
      %p59 = por %p57, %p58
      %p60 = scmp.ne.s32.totalorder %s52, %s54
      %p61 = scmp.eq.s32.totalorder %s23, 1
      %p62 = por %p60, %p61
      %p63 = scmp.ne.s32.totalorder %s54, %s55
      %p64 = scmp.eq.s32.totalorder %s23, 0
      %p65 = por %p63, %p64
      %p66 = scmp.ne.s32.totalorder %s54, %s55
      %p67 = scmp.eq.s32.totalorder %s24, 1
      %p68 = por %p66, %p67
      %p70 = scmp.ne.s32.totalorder %s55, %s69
      %p71 = scmp.eq.s32.totalorder %s24, 0
      %p72 = por %p70, %p71
      %s74 = sadd.s32 %s73, 1
      %p77 = scmp.eq.s32.totalorder %s18, 1
      %p78 = scmp.ne.s32.totalorder %s73, %s75
      %p79 = scmp.eq.s32.totalorder %s18, 0
      %p80 = por %p78, %p79
      %p81 = scmp.ne.s32.totalorder %s73, %s75
      %p82 = scmp.eq.s32.totalorder %s23, 1
      %p83 = por %p81, %p82
      %p84 = scmp.ne.s32.totalorder %s75, %s76
      %p85 = scmp.eq.s32.totalorder %s23, 0
      %p86 = por %p84, %p85
      %p87 = scmp.ne.s32.totalorder %s75, %s76
      %p88 = scmp.eq.s32.totalorder %s24, 1
      %p89 = por %p87, %p88
      %p91 = scmp.ne.s32.totalorder %s76, %s90
      %p92 = scmp.eq.s32.totalorder %s24, 0
      %p93 = por %p91, %p92
      %s95 = sadd.s32 %s94, 1
      %p98 = scmp.eq.s32.totalorder %s18, 1
      %p99 = scmp.ne.s32.totalorder %s94, %s96
      %p100 = scmp.eq.s32.totalorder %s18, 0
      %p101 = por %p99, %p100
      %p102 = scmp.ne.s32.totalorder %s94, %s96
      %p103 = scmp.eq.s32.totalorder %s23, 1
      %p104 = por %p102, %p103
      %p105 = scmp.ne.s32.totalorder %s96, %s97
      %p106 = scmp.eq.s32.totalorder %s23, 0
      %p107 = por %p105, %p106
      %p108 = scmp.ne.s32.totalorder %s96, %s97
      %p109 = scmp.eq.s32.totalorder %s24, 1
      %p110 = por %p108, %p109
      %p112 = scmp.ne.s32.totalorder %s97, %s111
      %p113 = scmp.eq.s32.totalorder %s24, 0
      %p114 = por %p112, %p113
      %s116 = sadd.s32 %s115, 1
      %p119 = scmp.eq.s32.totalorder %s18, 1
      %p120 = scmp.ne.s32.totalorder %s115, %s117
      %p121 = scmp.eq.s32.totalorder %s18, 0
      %p122 = por %p120, %p121
      %p123 = scmp.ne.s32.totalorder %s115, %s117
      %p124 = scmp.eq.s32.totalorder %s23, 1
      %p125 = por %p123, %p124
      %p126 = scmp.ne.s32.totalorder %s117, %s118
      %p127 = scmp.eq.s32.totalorder %s23, 0
      %p128 = por %p126, %p127
      %p129 = scmp.ne.s32.totalorder %s117, %s118
      %p130 = scmp.eq.s32.totalorder %s24, 1
      %p131 = por %p129, %p130
      %p133 = scmp.ne.s32.totalorder %s118, %s132
      %p134 = scmp.eq.s32.totalorder %s24, 0
      %p135 = por %p133, %p134
      %s136 = ssub.s32 %s18, %s25
      %p137 = scmp.eq.s32.totalorder %s136, 0
      %s139 = sadd.s32 %s138, 1
      %s140 = scalar_select %p137, %s138, %s139
      %p143 = pneg %p137
      %p144 = scmp.eq.s32.totalorder %s18, 1
      %p145 = por %p143, %p144
      %p146 = scmp.ne.s32.totalorder %s138, %s141
      %p147 = scmp.eq.s32.totalorder %s18, 0
      %p148 = por %p146, %p147
      %p149 = scmp.ne.s32.totalorder %s138, %s141
      %p150 = scmp.eq.s32.totalorder %s23, 1
      %p151 = por %p149, %p150
      %p152 = scmp.ne.s32.totalorder %s141, %s142
      %p153 = scmp.eq.s32.totalorder %s23, 0
      %p154 = por %p152, %p153
      %p155 = scmp.ne.s32.totalorder %s141, %s142
      %p156 = scmp.eq.s32.totalorder %s24, 1
      %p157 = por %p155, %p156
      %p159 = scmp.ne.s32.totalorder %s142, %s158
      %p160 = scmp.eq.s32.totalorder %s24, 0
      %p161 = por %p159, %p160
      %p162 = scmp.le.s32.totalorder 1, %s18
      %p163 = scmp.lt.s32.totalorder %s18, 3
      %p164 = pnand %p162, %p163
      %p165 = pneg %p164
      // Predicated region
      $region9: #{tpu_custom_call.1} parent=5 // pred_check
        _
      $region10: #{tpu_custom_call.1} parent=5 // pred_check_branch
        %167 = sbr.rel (%p164) target = $region12
      $region11: #{tpu_custom_call.1} parent=5 // pred_region
        %s168 = ssub.s32 %s18, 1
        // Predicated region
        $region13: #{tpu_custom_call.1} parent=11 // pred_check
          %p169 = pneg %p65
        $region14: #{tpu_custom_call.1} parent=11 // pred_check_branch
          %171 = sbr.rel (%p169) target = $region16
        $region15: #{tpu_custom_call.1} parent=11 // pred_region
          %s173 = ssub.s32 1536, 1536
          %174 = vsyncadd [#allocation8], %s173
          %s175 = sshll.u32 [#allocation7], 4
          %s176 = int_to_ptr.vmem [resolvable:$true] %s175
          %181 = dma.hbm_to_vmem [thread:$0]  %s1, 1536, %s176, [#allocation8], 128, 128, 8
        $region16: #{tpu_custom_call.1} parent=11 // pred_fallthru
          _
        // Predicated region
        $region17: #{tpu_custom_call.1} parent=11 // pred_check
          %p182 = pneg %p86
        $region18: #{tpu_custom_call.1} parent=11 // pred_check_branch
          %184 = sbr.rel (%p182) target = $region20
        $region19: #{tpu_custom_call.1} parent=11 // pred_region
          _
        $region20: #{tpu_custom_call.1} parent=11 // pred_fallthru
          _
        // Predicated region
        $region21: #{tpu_custom_call.1} parent=11 // pred_check
          %p185 = pneg %p107
        $region22: #{tpu_custom_call.1} parent=11 // pred_check_branch
          %187 = sbr.rel (%p185) target = $region24
        $region23: #{tpu_custom_call.1} parent=11 // pred_region
          %s189 = ssub.s32 3072, 3072
          %190 = vsyncadd [#allocation8], %s189
          %s191 = sshll.u32 [#allocation9], 4
          %s192 = int_to_ptr.vmem [resolvable:$true] %s191
          %197 = dma.hbm_to_vmem [thread:$0]  %s3, 3072, %s192, [#allocation8], 128, 128, 8
        $region24: #{tpu_custom_call.1} parent=11 // pred_fallthru
          _
        // Predicated region
        $region25: #{tpu_custom_call.1} parent=11 // pred_check
          %p198 = pneg %p128
        $region26: #{tpu_custom_call.1} parent=11 // pred_check_branch
          %200 = sbr.rel (%p198) target = $region28
        $region27: #{tpu_custom_call.1} parent=11 // pred_region
          _
        $region28: #{tpu_custom_call.1} parent=11 // pred_fallthru
          _
      $region12: #{tpu_custom_call.1} parent=5 // pred_fallthru
        _
      %p201 = scmp.lt.s32.totalorder %s18, 2
      // Predicated region
      $region29: #{tpu_custom_call.1} parent=5 // pred_check
        %p202 = pneg %p201
      $region30: #{tpu_custom_call.1} parent=5 // pred_check_branch
        %204 = sbr.rel (%p202) target = $region32
      $region31: #{tpu_custom_call.1} parent=5 // pred_region
        // Predicated region
        $region33: #{tpu_custom_call.1} parent=31 // pred_check
          %p205 = pneg %p38
        $region34: #{tpu_custom_call.1} parent=31 // pred_check_branch
          %207 = sbr.rel (%p205) target = $region36
        $region35: #{tpu_custom_call.1} parent=31 // pred_region
          %s208 = sand.u32 %s28, 1
          %s209 = scalar_lea.sflag [#allocation5], %s208
          %s210 = sand.u32 %s28, 1
          %s211 = smul.addr %s210, 32
          %s212 = scalar_lea.vmem [#allocation4], %s211
          %s214 = ssub.s32 512, 512
          %215 = vsyncadd %s209, %s214
          %s216 = smul.addr %s18, 128
          %s217 = scalar_lea.hbm %s0, %s216
          %s218 = sshll.u32 %s212, 4
          %s219 = int_to_ptr.vmem [resolvable:$true] %s218
          %224 = dma.hbm_to_vmem [thread:$0]  %s217, 512, %s219, %s209, 256, 128, 8
        $region36: #{tpu_custom_call.1} parent=31 // pred_fallthru
          _
      $region32: #{tpu_custom_call.1} parent=5 // pred_fallthru
        _
      %p225 = scmp.le.s32.totalorder 1, %s18
      %p226 = scmp.lt.s32.totalorder %s18, 3
      %p227 = pnand %p225, %p226
      %p228 = pneg %p227
      // Predicated region
      $region37: #{tpu_custom_call.1} parent=5 // pred_check
        _
      $region38: #{tpu_custom_call.1} parent=5 // pred_check_branch
        %230 = sbr.rel (%p227) target = $region40
      $region39: #{tpu_custom_call.1} parent=5 // pred_region
        %s231 = ssub.s32 %s18, 1
        %s232 = sand.u32 %s31, 1
        %s233 = scalar_lea.sflag [#allocation5], %s232
        %s234 = sand.u32 %s31, 1
        %s235 = smul.addr %s234, 32
        %s236 = scalar_lea.vmem [#allocation4], %s235
        // Predicated region
        $region41: #{tpu_custom_call.1} parent=39 // pred_check
          %p237 = pneg %p44
        $region42: #{tpu_custom_call.1} parent=39 // pred_check_branch
          %239 = sbr.rel (%p237) target = $region44
        $region43: #{tpu_custom_call.1} parent=39 // pred_region
          %240 = dma.done %s233, 512
        $region44: #{tpu_custom_call.1} parent=39 // pred_fallthru
          _
        // Predicated region
        $region45: #{tpu_custom_call.1} parent=39 // pred_check
          %p241 = pneg %p65
        $region46: #{tpu_custom_call.1} parent=39 // pred_check_branch
          %243 = sbr.rel (%p241) target = $region48
        $region47: #{tpu_custom_call.1} parent=39 // pred_region
          %244 = dma.done [#allocation8], 1536
        $region48: #{tpu_custom_call.1} parent=39 // pred_fallthru
          _
        // Predicated region
        $region49: #{tpu_custom_call.1} parent=39 // pred_check
          %p245 = pneg %p107
        $region50: #{tpu_custom_call.1} parent=39 // pred_check_branch
          %247 = sbr.rel (%p245) target = $region52
        $region51: #{tpu_custom_call.1} parent=39 // pred_region
          %248 = dma.done [#allocation8], 3072
        $region52: #{tpu_custom_call.1} parent=39 // pred_fallthru
          _
        %s249 = sand.u32 %s31, 1
        %s250 = scalar_lea.sflag [#allocation5], %s249
        %s251 = sand.u32 %s31, 1
        %s252 = smul.addr %s251, 32
        %s253 = scalar_lea.vmem [#allocation4], %s252
        %p254 = pneg %p44
        %p255 = pneg %p41
        %p256 = pneg %p65
        %p257 = pneg %p62
        %p258 = pneg %p86
        %p259 = pneg %p83
        %p260 = pneg %p107
        %p261 = pneg %p104
        %p262 = pneg %p128
        %p263 = pneg %p125
        %p264 = pneg %p154
        %p265 = pneg %p151
        %s266 = sand.u32 %s141, 1
        %s267 = scalar_lea.sflag [#allocation6], %s266
        %s268 = sand.u32 %s141, 1
        %s269 = smul.addr %s268, 8
        %s270 = scalar_lea.vmem [#allocation10], %s269
        %v271 = vld [vmem:[%s236] sm:$0xff]
        %s272 = scalar_lea.vmem %s236, 8 [#allocation4]
        %v273 = vld [vmem:[%s272] sm:$0xff]
        %v274 = vmax.f32 %v271, %v273
        %s275 = scalar_lea.vmem %s236, 16 [#allocation4]
        %v276 = vld [vmem:[%s275] sm:$0xff]
        %s277 = scalar_lea.vmem %s236, 24 [#allocation4]
        %v278 = vld [vmem:[%s277] sm:$0xff]
        %v279 = vmax.f32 %v276, %v278
        %v280 = vmax.f32 %v274, %v279
        %vm281 = vcmask 253952
        %282 = vst.msk [vmem:[#allocation2] sm:$0x1] %vm281, 0.0
        %283 = vst.msk [vmem:[#allocation2 + $0x9] sm:$0x1] %vm281, 0.0
        %vm284 = vcmask 261120
        %285 = vst.msk [vmem:[#allocation2 + $0x1] sm:$0xff] %vm284, %v280
        %v286 = vld [vmem:[#allocation2] sm:$0xff]
        %v287 = vld [vmem:[#allocation7] sm:$0xff]
        %v288 = vld [vmem:[#allocation7 + $0x8] sm:$0xff]
        %v289 = vld [vmem:[#allocation7 + $0x10] sm:$0xff]
        %v290 = vld [vmem:[#allocation7 + $0x18] sm:$0xff]
        %v291 = vld [vmem:[#allocation2 + $0x1] sm:$0xff]
        %s292 = scalar_lea.vmem [#allocation7], 32
        %v293 = vld [vmem:[%s292] sm:$0xff]
        %v294 = vld [vmem:[%s292 + $0x8] sm:$0xff]
        %v295 = vld [vmem:[%s292 + $0x10] sm:$0xff]
        %v296 = vld [vmem:[%s292 + $0x18] sm:$0xff]
        %v298 = vsel %vm284, %v291, 0
        %300 = vmatprep.subr.mxu0 0.0
        %301 = vmatpush1.msra.mxu0 %v293
        %302 = vmatprep.subr.mxu0 0.0
        %303 = vmatpush1.msra.mxu0 %v294
        %304 = vmatprep.subr.mxu0 0.0
        %305 = vmatpush1.msra.mxu0 %v295
        %306 = vmatprep.subr.mxu0 0.0
        %307 = vmatpush1.msra.mxu0 %v296
        %308 = vmatprep.subr.mxu0 0.0
        %309 = vmatpush1.msra.mxu0 0.0
        %310 = vmatprep.subr.mxu0 0.0
        %311 = vmatpush1.msra.mxu0 0.0
        %312 = vmatprep.subr.mxu0 0.0
        %313 = vmatpush1.msra.mxu0 0.0
        %314 = vmatprep.subr.mxu0 0.0
        %315 = vmatpush1.msra.mxu0 0.0
        %316 = vmatprep.subr.mxu0 0.0
        %317 = vmatpush1.msra.mxu0 0.0
        %318 = vmatprep.subr.mxu0 0.0
        %319 = vmatpush1.msra.mxu0 0.0
        %320 = vmatprep.subr.mxu0 0.0
        %321 = vmatpush1.msra.mxu0 0.0
        %322 = vmatprep.subr.mxu0 0.0
        %323 = vmatpush1.msra.mxu0 0.0
        %324 = vmatprep.subr.mxu0 0.0
        %325 = vmatpush1.msra.mxu0 0.0
        %326 = vmatprep.subr.mxu0 0.0
        %327 = vmatpush1.msra.mxu0 0.0
        %328 = vmatprep.subr.mxu0 0.0
        %329 = vmatpush1.msra.mxu0 0.0
        %330 = vmatprep.subr.mxu0 0.0
        %331 = vmatpush1.msra.mxu0 0.0
        %332 = vmatprep.subr.mxu0 0.0
        %333 = vmatpush1.msra.mxu0 0.0
        %334 = vmatprep.subr.mxu0 0.0
        %335 = vmatpush1.msra.mxu0 0.0
        %336 = vmatprep.subr.mxu0 0.0
        %337 = vmatpush1.msra.mxu0 0.0
        %338 = vmatprep.subr.mxu0 0.0
        %339 = vmatpush1.msra.mxu0 0.0
        %340 = vmatprep.subr.mxu0 0.0
        %341 = vmatpush1.msra.mxu0 0.0
        %342 = vmatprep.subr.mxu0 0.0
        %343 = vmatpush1.msra.mxu0 0.0
        %344 = vmatprep.subr.mxu0 0.0
        %345 = vmatpush1.msra.mxu0 0.0
        %346 = vmatprep.subr.mxu0 0.0
        %347 = vmatpush1.msra.mxu0 0.0
        %348 = vmatprep.subr.mxu0 0.0
        %349 = vmatpush1.msra.mxu0 0.0
        %350 = vmatprep.subr.mxu0 0.0
        %351 = vmatpush1.msra.mxu0 0.0
        %352 = vmatprep.subr.mxu0 0.0
        %353 = vmatpush1.msra.mxu0 0.0
        %354 = vmatprep.subr.mxu0 0.0
        %355 = vmatpush1.msra.mxu0 0.0
        %356 = vmatprep.subr.mxu0 0.0
        %357 = vmatpush1.msra.mxu0 0.0
        %358 = vmatprep.subr.mxu0 0.0
        %359 = vmatpush1.msra.mxu0 0.0
        %360 = vmatprep.subr.mxu0 0.0
        %361 = vmatpush1.msra.mxu0 0.0
        %362 = vmatprep.subr.mxu0 0.0
        %363 = vmatpush1.msra.mxu0 0.0
        %364 = vmatprep.mubr.f32.mxu0 0.0
        %365 = vmatmul.mubr.f32.gmra.mrb[0].mxu0 %v298
        %v366 = vpop.f32.mrb[0].mxu0
        %v367 = vadd.f32 0.0, %v366
        %v368 = vpop.f32.mrb[0].mxu0
        %369 = vdwg.mxu0
        %v371 = vsel %vm284, %v286, 0
        %373 = vmatprep.subr.mxu0 0.0
        %374 = vmatpush1.msra.mxu0 %v287
        %375 = vmatprep.subr.mxu0 0.0
        %376 = vmatpush1.msra.mxu0 %v288
        %377 = vmatprep.subr.mxu0 0.0
        %378 = vmatpush1.msra.mxu0 %v289
        %379 = vmatprep.subr.mxu0 0.0
        %380 = vmatpush1.msra.mxu0 %v290
        %381 = vmatprep.subr.mxu0 0.0
        %382 = vmatpush1.msra.mxu0 0.0
        %383 = vmatprep.subr.mxu0 0.0
        %384 = vmatpush1.msra.mxu0 0.0
        %385 = vmatprep.subr.mxu0 0.0
        %386 = vmatpush1.msra.mxu0 0.0
        %387 = vmatprep.subr.mxu0 0.0
        %388 = vmatpush1.msra.mxu0 0.0
        %389 = vmatprep.subr.mxu0 0.0
        %390 = vmatpush1.msra.mxu0 0.0
        %391 = vmatprep.subr.mxu0 0.0
        %392 = vmatpush1.msra.mxu0 0.0
        %393 = vmatprep.subr.mxu0 0.0
        %394 = vmatpush1.msra.mxu0 0.0
        %395 = vmatprep.subr.mxu0 0.0
        %396 = vmatpush1.msra.mxu0 0.0
        %397 = vmatprep.subr.mxu0 0.0
        %398 = vmatpush1.msra.mxu0 0.0
        %399 = vmatprep.subr.mxu0 0.0
        %400 = vmatpush1.msra.mxu0 0.0
        %401 = vmatprep.subr.mxu0 0.0
        %402 = vmatpush1.msra.mxu0 0.0
        %403 = vmatprep.subr.mxu0 0.0
        %404 = vmatpush1.msra.mxu0 0.0
        %405 = vmatprep.subr.mxu0 0.0
        %406 = vmatpush1.msra.mxu0 0.0
        %407 = vmatprep.subr.mxu0 0.0
        %408 = vmatpush1.msra.mxu0 0.0
        %409 = vmatprep.subr.mxu0 0.0
        %410 = vmatpush1.msra.mxu0 0.0
        %411 = vmatprep.subr.mxu0 0.0
        %412 = vmatpush1.msra.mxu0 0.0
        %413 = vmatprep.subr.mxu0 0.0
        %414 = vmatpush1.msra.mxu0 0.0
        %415 = vmatprep.subr.mxu0 0.0
        %416 = vmatpush1.msra.mxu0 0.0
        %417 = vmatprep.subr.mxu0 0.0
        %418 = vmatpush1.msra.mxu0 0.0
        %419 = vmatprep.subr.mxu0 0.0
        %420 = vmatpush1.msra.mxu0 0.0
        %421 = vmatprep.subr.mxu0 0.0
        %422 = vmatpush1.msra.mxu0 0.0
        %423 = vmatprep.subr.mxu0 0.0
        %424 = vmatpush1.msra.mxu0 0.0
        %425 = vmatprep.subr.mxu0 0.0
        %426 = vmatpush1.msra.mxu0 0.0
        %427 = vmatprep.subr.mxu0 0.0
        %428 = vmatpush1.msra.mxu0 0.0
        %429 = vmatprep.subr.mxu0 0.0
        %430 = vmatpush1.msra.mxu0 0.0
        %431 = vmatprep.subr.mxu0 0.0
        %432 = vmatpush1.msra.mxu0 0.0
        %433 = vmatprep.subr.mxu0 0.0
        %434 = vmatpush1.msra.mxu0 0.0
        %435 = vmatprep.subr.mxu0 0.0
        %436 = vmatpush1.msra.mxu0 0.0
        %437 = vmatprep.mubr.f32.mxu0 0.0
        %438 = vmatmul.mubr.f32.gmra.mrb[0].mxu0 %v371
        %v439 = vpop.f32.mrb[0].mxu0
        %v440 = vadd.f32 %v367, %v439
        %v441 = vpop.f32.mrb[0].mxu0
        %442 = vdwg.mxu0
        %v443 = vld [vmem:[#allocation2 + $0x2] sm:$0xff]
        %s444 = scalar_lea.vmem [#allocation7], 64
        %v445 = vld [vmem:[%s444] sm:$0xff]
        %v446 = vld [vmem:[%s444 + $0x8] sm:$0xff]
        %v447 = vld [vmem:[%s444 + $0x10] sm:$0xff]
        %v448 = vld [vmem:[%s444 + $0x18] sm:$0xff]
        %v450 = vsel %vm284, %v443, 0
        %452 = vmatprep.subr.mxu0 0.0
        %453 = vmatpush1.msra.mxu0 %v445
        %454 = vmatprep.subr.mxu0 0.0
        %455 = vmatpush1.msra.mxu0 %v446
        %456 = vmatprep.subr.mxu0 0.0
        %457 = vmatpush1.msra.mxu0 %v447
        %458 = vmatprep.subr.mxu0 0.0
        %459 = vmatpush1.msra.mxu0 %v448
        %460 = vmatprep.subr.mxu0 0.0
        %461 = vmatpush1.msra.mxu0 0.0
        %462 = vmatprep.subr.mxu0 0.0
        %463 = vmatpush1.msra.mxu0 0.0
        %464 = vmatprep.subr.mxu0 0.0
        %465 = vmatpush1.msra.mxu0 0.0
        %466 = vmatprep.subr.mxu0 0.0
        %467 = vmatpush1.msra.mxu0 0.0
        %468 = vmatprep.subr.mxu0 0.0
        %469 = vmatpush1.msra.mxu0 0.0
        %470 = vmatprep.subr.mxu0 0.0
        %471 = vmatpush1.msra.mxu0 0.0
        %472 = vmatprep.subr.mxu0 0.0
        %473 = vmatpush1.msra.mxu0 0.0
        %474 = vmatprep.subr.mxu0 0.0
        %475 = vmatpush1.msra.mxu0 0.0
        %476 = vmatprep.subr.mxu0 0.0
        %477 = vmatpush1.msra.mxu0 0.0
        %478 = vmatprep.subr.mxu0 0.0
        %479 = vmatpush1.msra.mxu0 0.0
        %480 = vmatprep.subr.mxu0 0.0
        %481 = vmatpush1.msra.mxu0 0.0
        %482 = vmatprep.subr.mxu0 0.0
        %483 = vmatpush1.msra.mxu0 0.0
        %484 = vmatprep.subr.mxu0 0.0
        %485 = vmatpush1.msra.mxu0 0.0
        %486 = vmatprep.subr.mxu0 0.0
        %487 = vmatpush1.msra.mxu0 0.0
        %488 = vmatprep.subr.mxu0 0.0
        %489 = vmatpush1.msra.mxu0 0.0
        %490 = vmatprep.subr.mxu0 0.0
        %491 = vmatpush1.msra.mxu0 0.0
        %492 = vmatprep.subr.mxu0 0.0
        %493 = vmatpush1.msra.mxu0 0.0
        %494 = vmatprep.subr.mxu0 0.0
        %495 = vmatpush1.msra.mxu0 0.0
        %496 = vmatprep.subr.mxu0 0.0
        %497 = vmatpush1.msra.mxu0 0.0
        %498 = vmatprep.subr.mxu0 0.0
        %499 = vmatpush1.msra.mxu0 0.0
        %500 = vmatprep.subr.mxu0 0.0
        %501 = vmatpush1.msra.mxu0 0.0
        %502 = vmatprep.subr.mxu0 0.0
        %503 = vmatpush1.msra.mxu0 0.0
        %504 = vmatprep.subr.mxu0 0.0
        %505 = vmatpush1.msra.mxu0 0.0
        %506 = vmatprep.subr.mxu0 0.0
        %507 = vmatpush1.msra.mxu0 0.0
        %508 = vmatprep.subr.mxu0 0.0
        %509 = vmatpush1.msra.mxu0 0.0
        %510 = vmatprep.subr.mxu0 0.0
        %511 = vmatpush1.msra.mxu0 0.0
        %512 = vmatprep.subr.mxu0 0.0
        %513 = vmatpush1.msra.mxu0 0.0
        %514 = vmatprep.subr.mxu0 0.0
        %515 = vmatpush1.msra.mxu0 0.0
        %516 = vmatprep.mubr.f32.mxu0 0.0
        %517 = vmatmul.mubr.f32.gmra.mrb[0].mxu0 %v450
        %v518 = vpop.f32.mrb[0].mxu0
        %v519 = vadd.f32 0.0, %v518
        %v520 = vpop.f32.mrb[0].mxu0
        %521 = vdwg.mxu0
        %v522 = vadd.f32 %v440, %v519
        %v523 = vld [vmem:[%s2] sm:$0x1]
        %v525 = vlaneseq
        %v526 = vshrl.u32 %v525, 7
        %v527 = vsub.s32 0, %v526
        %v528 = vrot.slane %v523, %v527
        %v530 = vadd.f32 %v522, %v528
        %v531 = vmax.f32 %v530, 0.0
        %vm532 = vcmask 523264
        %533 = vst.msk [vmem:[#allocation3 + $0x1] sm:$0xff] %vm532, %v531
        %vm534 = vcmask 516096
        %535 = vst.msk [vmem:[#allocation3] sm:$0x1] %vm534, 0.0
        %536 = vst.msk [vmem:[#allocation3 + $0x9] sm:$0x1] %vm534, 0.0
        %v537 = vld [vmem:[#allocation3] sm:$0xff]
        %v538 = vld [vmem:[#allocation9] sm:$0xff]
        %v539 = vld [vmem:[#allocation9 + $0x8] sm:$0xff]
        %v540 = vld [vmem:[#allocation9 + $0x10] sm:$0xff]
        %v541 = vld [vmem:[#allocation9 + $0x18] sm:$0xff]
        %v542 = vld [vmem:[#allocation9 + $0x20] sm:$0xff]
        %v543 = vld [vmem:[#allocation9 + $0x28] sm:$0xff]
        %v544 = vld [vmem:[#allocation9 + $0x30] sm:$0xff]
        %v545 = vld [vmem:[#allocation9 + $0x38] sm:$0xff]
        %v546 = vld [vmem:[#allocation3 + $0x1] sm:$0xff]
        %s547 = scalar_lea.vmem [#allocation9], 64
        %v548 = vld [vmem:[%s547] sm:$0xff]
        %v549 = vld [vmem:[%s547 + $0x8] sm:$0xff]
        %v550 = vld [vmem:[%s547 + $0x10] sm:$0xff]
        %v551 = vld [vmem:[%s547 + $0x18] sm:$0xff]
        %v552 = vld [vmem:[%s547 + $0x20] sm:$0xff]
        %v553 = vld [vmem:[%s547 + $0x28] sm:$0xff]
        %v554 = vld [vmem:[%s547 + $0x30] sm:$0xff]
        %v555 = vld [vmem:[%s547 + $0x38] sm:$0xff]
        %v557 = vsel %vm532, %v546, 0
        %559 = vmatprep.subr.mxu0 0.0
        %560 = vmatpush1.msra.mxu0 %v548
        %561 = vmatprep.subr.mxu0 0.0
        %562 = vmatpush1.msra.mxu0 %v549
        %563 = vmatprep.subr.mxu0 0.0
        %564 = vmatpush1.msra.mxu0 %v550
        %565 = vmatprep.subr.mxu0 0.0
        %566 = vmatpush1.msra.mxu0 %v551
        %567 = vmatprep.subr.mxu0 0.0
        %568 = vmatpush1.msra.mxu0 %v552
        %569 = vmatprep.subr.mxu0 0.0
        %570 = vmatpush1.msra.mxu0 %v553
        %571 = vmatprep.subr.mxu0 0.0
        %572 = vmatpush1.msra.mxu0 %v554
        %573 = vmatprep.subr.mxu0 0.0
        %574 = vmatpush1.msra.mxu0 %v555
        %575 = vmatprep.subr.mxu0 0.0
        %576 = vmatpush1.msra.mxu0 0.0
        %577 = vmatprep.subr.mxu0 0.0
        %578 = vmatpush1.msra.mxu0 0.0
        %579 = vmatprep.subr.mxu0 0.0
        %580 = vmatpush1.msra.mxu0 0.0
        %581 = vmatprep.subr.mxu0 0.0
        %582 = vmatpush1.msra.mxu0 0.0
        %583 = vmatprep.subr.mxu0 0.0
        %584 = vmatpush1.msra.mxu0 0.0
        %585 = vmatprep.subr.mxu0 0.0
        %586 = vmatpush1.msra.mxu0 0.0
        %587 = vmatprep.subr.mxu0 0.0
        %588 = vmatpush1.msra.mxu0 0.0
        %589 = vmatprep.subr.mxu0 0.0
        %590 = vmatpush1.msra.mxu0 0.0
        %591 = vmatprep.subr.mxu0 0.0
        %592 = vmatpush1.msra.mxu0 0.0
        %593 = vmatprep.subr.mxu0 0.0
        %594 = vmatpush1.msra.mxu0 0.0
        %595 = vmatprep.subr.mxu0 0.0
        %596 = vmatpush1.msra.mxu0 0.0
        %597 = vmatprep.subr.mxu0 0.0
        %598 = vmatpush1.msra.mxu0 0.0
        %599 = vmatprep.subr.mxu0 0.0
        %600 = vmatpush1.msra.mxu0 0.0
        %601 = vmatprep.subr.mxu0 0.0
        %602 = vmatpush1.msra.mxu0 0.0
        %603 = vmatprep.subr.mxu0 0.0
        %604 = vmatpush1.msra.mxu0 0.0
        %605 = vmatprep.subr.mxu0 0.0
        %606 = vmatpush1.msra.mxu0 0.0
        %607 = vmatprep.subr.mxu0 0.0
        %608 = vmatpush1.msra.mxu0 0.0
        %609 = vmatprep.subr.mxu0 0.0
        %610 = vmatpush1.msra.mxu0 0.0
        %611 = vmatprep.subr.mxu0 0.0
        %612 = vmatpush1.msra.mxu0 0.0
        %613 = vmatprep.subr.mxu0 0.0
        %614 = vmatpush1.msra.mxu0 0.0
        %615 = vmatprep.subr.mxu0 0.0
        %616 = vmatpush1.msra.mxu0 0.0
        %617 = vmatprep.subr.mxu0 0.0
        %618 = vmatpush1.msra.mxu0 0.0
        %619 = vmatprep.subr.mxu0 0.0
        %620 = vmatpush1.msra.mxu0 0.0
        %621 = vmatprep.subr.mxu0 0.0
        %622 = vmatpush1.msra.mxu0 0.0
        %623 = vmatprep.mubr.f32.mxu0 0.0
        %624 = vmatmul.mubr.f32.gmra.mrb[0].mxu0 %v557
        %v625 = vpop.f32.mrb[0].mxu0
        %v626 = vadd.f32 0.0, %v625
        %v627 = vpop.f32.mrb[0].mxu0
        %628 = vdwg.mxu0
        %v630 = vsel %vm532, %v537, 0
        %632 = vmatprep.subr.mxu0 0.0
        %633 = vmatpush1.msra.mxu0 %v538
        %634 = vmatprep.subr.mxu0 0.0
        %635 = vmatpush1.msra.mxu0 %v539
        %636 = vmatprep.subr.mxu0 0.0
        %637 = vmatpush1.msra.mxu0 %v540
        %638 = vmatprep.subr.mxu0 0.0
        %639 = vmatpush1.msra.mxu0 %v541
        %640 = vmatprep.subr.mxu0 0.0
        %641 = vmatpush1.msra.mxu0 %v542
        %642 = vmatprep.subr.mxu0 0.0
        %643 = vmatpush1.msra.mxu0 %v543
        %644 = vmatprep.subr.mxu0 0.0
        %645 = vmatpush1.msra.mxu0 %v544
        %646 = vmatprep.subr.mxu0 0.0
        %647 = vmatpush1.msra.mxu0 %v545
        %648 = vmatprep.subr.mxu0 0.0
        %649 = vmatpush1.msra.mxu0 0.0
        %650 = vmatprep.subr.mxu0 0.0
        %651 = vmatpush1.msra.mxu0 0.0
        %652 = vmatprep.subr.mxu0 0.0
        %653 = vmatpush1.msra.mxu0 0.0
        %654 = vmatprep.subr.mxu0 0.0
        %655 = vmatpush1.msra.mxu0 0.0
        %656 = vmatprep.subr.mxu0 0.0
        %657 = vmatpush1.msra.mxu0 0.0
        %658 = vmatprep.subr.mxu0 0.0
        %659 = vmatpush1.msra.mxu0 0.0
        %660 = vmatprep.subr.mxu0 0.0
        %661 = vmatpush1.msra.mxu0 0.0
        %662 = vmatprep.subr.mxu0 0.0
        %663 = vmatpush1.msra.mxu0 0.0
        %664 = vmatprep.subr.mxu0 0.0
        %665 = vmatpush1.msra.mxu0 0.0
        %666 = vmatprep.subr.mxu0 0.0
        %667 = vmatpush1.msra.mxu0 0.0
        %668 = vmatprep.subr.mxu0 0.0
        %669 = vmatpush1.msra.mxu0 0.0
        %670 = vmatprep.subr.mxu0 0.0
        %671 = vmatpush1.msra.mxu0 0.0
        %672 = vmatprep.subr.mxu0 0.0
        %673 = vmatpush1.msra.mxu0 0.0
        %674 = vmatprep.subr.mxu0 0.0
        %675 = vmatpush1.msra.mxu0 0.0
        %676 = vmatprep.subr.mxu0 0.0
        %677 = vmatpush1.msra.mxu0 0.0
        %678 = vmatprep.subr.mxu0 0.0
        %679 = vmatpush1.msra.mxu0 0.0
        %680 = vmatprep.subr.mxu0 0.0
        %681 = vmatpush1.msra.mxu0 0.0
        %682 = vmatprep.subr.mxu0 0.0
        %683 = vmatpush1.msra.mxu0 0.0
        %684 = vmatprep.subr.mxu0 0.0
        %685 = vmatpush1.msra.mxu0 0.0
        %686 = vmatprep.subr.mxu0 0.0
        %687 = vmatpush1.msra.mxu0 0.0
        %688 = vmatprep.subr.mxu0 0.0
        %689 = vmatpush1.msra.mxu0 0.0
        %690 = vmatprep.subr.mxu0 0.0
        %691 = vmatpush1.msra.mxu0 0.0
        %692 = vmatprep.subr.mxu0 0.0
        %693 = vmatpush1.msra.mxu0 0.0
        %694 = vmatprep.subr.mxu0 0.0
        %695 = vmatpush1.msra.mxu0 0.0
        %696 = vmatprep.mubr.f32.mxu0 0.0
        %697 = vmatmul.mubr.f32.gmra.mrb[0].mxu0 %v630
        %v698 = vpop.f32.mrb[0].mxu0
        %v699 = vadd.f32 %v626, %v698
        %v700 = vpop.f32.mrb[0].mxu0
        %701 = vdwg.mxu0
        %v702 = vld [vmem:[#allocation3 + $0x2] sm:$0xff]
        %s703 = scalar_lea.vmem [#allocation9], 128
        %v704 = vld [vmem:[%s703] sm:$0xff]
        %v705 = vld [vmem:[%s703 + $0x8] sm:$0xff]
        %v706 = vld [vmem:[%s703 + $0x10] sm:$0xff]
        %v707 = vld [vmem:[%s703 + $0x18] sm:$0xff]
        %v708 = vld [vmem:[%s703 + $0x20] sm:$0xff]
        %v709 = vld [vmem:[%s703 + $0x28] sm:$0xff]
        %v710 = vld [vmem:[%s703 + $0x30] sm:$0xff]
        %v711 = vld [vmem:[%s703 + $0x38] sm:$0xff]
        %v713 = vsel %vm532, %v702, 0
        %715 = vmatprep.subr.mxu0 0.0
        %716 = vmatpush1.msra.mxu0 %v704
        %717 = vmatprep.subr.mxu0 0.0
        %718 = vmatpush1.msra.mxu0 %v705
        %719 = vmatprep.subr.mxu0 0.0
        %720 = vmatpush1.msra.mxu0 %v706
        %721 = vmatprep.subr.mxu0 0.0
        %722 = vmatpush1.msra.mxu0 %v707
        %723 = vmatprep.subr.mxu0 0.0
        %724 = vmatpush1.msra.mxu0 %v708
        %725 = vmatprep.subr.mxu0 0.0
        %726 = vmatpush1.msra.mxu0 %v709
        %727 = vmatprep.subr.mxu0 0.0
        %728 = vmatpush1.msra.mxu0 %v710
        %729 = vmatprep.subr.mxu0 0.0
        %730 = vmatpush1.msra.mxu0 %v711
        %731 = vmatprep.subr.mxu0 0.0
        %732 = vmatpush1.msra.mxu0 0.0
        %733 = vmatprep.subr.mxu0 0.0
        %734 = vmatpush1.msra.mxu0 0.0
        %735 = vmatprep.subr.mxu0 0.0
        %736 = vmatpush1.msra.mxu0 0.0
        %737 = vmatprep.subr.mxu0 0.0
        %738 = vmatpush1.msra.mxu0 0.0
        %739 = vmatprep.subr.mxu0 0.0
        %740 = vmatpush1.msra.mxu0 0.0
        %741 = vmatprep.subr.mxu0 0.0
        %742 = vmatpush1.msra.mxu0 0.0
        %743 = vmatprep.subr.mxu0 0.0
        %744 = vmatpush1.msra.mxu0 0.0
        %745 = vmatprep.subr.mxu0 0.0
        %746 = vmatpush1.msra.mxu0 0.0
        %747 = vmatprep.subr.mxu0 0.0
        %748 = vmatpush1.msra.mxu0 0.0
        %749 = vmatprep.subr.mxu0 0.0
        %750 = vmatpush1.msra.mxu0 0.0
        %751 = vmatprep.subr.mxu0 0.0
        %752 = vmatpush1.msra.mxu0 0.0
        %753 = vmatprep.subr.mxu0 0.0
        %754 = vmatpush1.msra.mxu0 0.0
        %755 = vmatprep.subr.mxu0 0.0
        %756 = vmatpush1.msra.mxu0 0.0
        %757 = vmatprep.subr.mxu0 0.0
        %758 = vmatpush1.msra.mxu0 0.0
        %759 = vmatprep.subr.mxu0 0.0
        %760 = vmatpush1.msra.mxu0 0.0
        %761 = vmatprep.subr.mxu0 0.0
        %762 = vmatpush1.msra.mxu0 0.0
        %763 = vmatprep.subr.mxu0 0.0
        %764 = vmatpush1.msra.mxu0 0.0
        %765 = vmatprep.subr.mxu0 0.0
        %766 = vmatpush1.msra.mxu0 0.0
        %767 = vmatprep.subr.mxu0 0.0
        %768 = vmatpush1.msra.mxu0 0.0
        %769 = vmatprep.subr.mxu0 0.0
        %770 = vmatpush1.msra.mxu0 0.0
        %771 = vmatprep.subr.mxu0 0.0
        %772 = vmatpush1.msra.mxu0 0.0
        %773 = vmatprep.subr.mxu0 0.0
        %774 = vmatpush1.msra.mxu0 0.0
        %775 = vmatprep.subr.mxu0 0.0
        %776 = vmatpush1.msra.mxu0 0.0
        %777 = vmatprep.subr.mxu0 0.0
        %778 = vmatpush1.msra.mxu0 0.0
        %779 = vmatprep.mubr.f32.mxu0 0.0
        %780 = vmatmul.mubr.f32.gmra.mrb[0].mxu0 %v713
        %v781 = vpop.f32.mrb[0].mxu0
        %v782 = vadd.f32 0.0, %v781
        %v783 = vpop.f32.mrb[0].mxu0
        %784 = vdwg.mxu0
        %v785 = vadd.f32 %v699, %v782
        %v786 = vld [vmem:[%s4] sm:$0x1]
        %v788 = vlaneseq
        %v789 = vshrl.u32 %v788, 7
        %v790 = vsub.s32 0, %v789
        %v791 = vrot.slane %v786, %v790
        %v793 = vadd.f32 %v785, %v791
        %v794 = vmax.f32 %v793, 0.0
        %795 = vst.msk [vmem:[%s270] sm:$0xff] %vm532, %v794
        %s796 = sand.u32 %s141, 1
        %s797 = scalar_lea.sflag [#allocation6], %s796
        %s798 = sand.u32 %s141, 1
        %s799 = smul.addr %s798, 8
        %s800 = scalar_lea.vmem [#allocation10], %s799
        // Predicated region
        $region53: #{tpu_custom_call.1} parent=39 // pred_check
          %p801 = pneg %p151
        $region54: #{tpu_custom_call.1} parent=39 // pred_check_branch
          %803 = sbr.rel (%p801) target = $region56
        $region55: #{tpu_custom_call.1} parent=39 // pred_region
          %s805 = ssub.s32 128, 128
          %806 = vsyncadd %s797, %s805
          %s807 = smul.addr %s23, 128
          %s808 = scalar_lea.hbm %s5, %s807
          %s810 = sshll.u32 %s800, 4
          %s811 = int_to_ptr.vmem [resolvable:$true] %s810
          %813 = dma.vmem_to_hbm [thread:$0]  %s811, 128, %s808, %s797
        $region56: #{tpu_custom_call.1} parent=39 // pred_fallthru
          _
      $region40: #{tpu_custom_call.1} parent=5 // pred_fallthru
        _
      %p814 = scmp.le.s32.totalorder 2, %s18
      // Predicated region
      $region57: #{tpu_custom_call.1} parent=5 // pred_check
        %p815 = pneg %p814
      $region58: #{tpu_custom_call.1} parent=5 // pred_check_branch
        %817 = sbr.rel (%p815) target = $region60
      $region59: #{tpu_custom_call.1} parent=5 // pred_region
        %s818 = ssub.s32 %s18, 2
        // Predicated region
        $region61: #{tpu_custom_call.1} parent=59 // pred_check
          %p819 = pneg %p157
        $region62: #{tpu_custom_call.1} parent=59 // pred_check_branch
          %821 = sbr.rel (%p819) target = $region64
        $region63: #{tpu_custom_call.1} parent=59 // pred_region
          %s822 = sand.u32 %s142, 1
          %s823 = scalar_lea.sflag [#allocation6], %s822
          %s824 = sand.u32 %s142, 1
          %s825 = smul.addr %s824, 8
          %s826 = scalar_lea.vmem [#allocation10], %s825
          %827 = dma.done %s823, 128
        $region64: #{tpu_custom_call.1} parent=59 // pred_fallthru
          _
      $region60: #{tpu_custom_call.1} parent=5 // pred_fallthru
        _
    $region6: #{tpu_custom_call.1} parent=1 // loop_footer
      %s22 = sadd.s32 1, %s18
    $region7: #{tpu_custom_call.1} parent=1 // loop_footer_branch
      %17 = sbr.rel target = $region3
    $region8: #{tpu_custom_call.1} parent=1 // loop_exit
      _
    %828 = vsyncpa [#allocation5], 1
    %s829 = scalar_lea.sflag [#allocation5], 1
    %830 = vsyncpa %s829, 1
    %831 = vsyncpa [#allocation8], 1
    %832 = vsyncpa [#allocation6], 1
    %s833 = scalar_lea.sflag [#allocation6], 1
    %834 = vsyncpa %s833, 1

</llo_original>
